<compile_context>
chip_gen: v6e
topology: v6e:2x2x1
jax: 0.10.0
libtpu: 0.0.40
codegen_flags: <defaults>
</compile_context>

<pallas_src>
import functools

import jax
import jax.numpy as jnp
from jax.experimental import pallas as pl
from jax.experimental.pallas import tpu as pltpu


# Per-buffer VMEM budget for one (N, tile_dl) layer slab.  The BlockSpec
# pipeline double-buffers it (~2x this), far below every scoped-VMEM default
# (16 MiB v5e / 32 MiB v6e / 32-of-64 MiB v7x), so no vmem_limit override is
# needed and the same tile choice is valid on all three generations.
_LAYER_TILE_BYTES = 1 << 20          # 1 MiB (in the input dtype)
_L1_INTERMEDIATE_BYTES = 1 << 20     # cap on the (N, N, tile) f32 |diff| temp


def _choose_tile_dl(dl, n, itemsize, metric):
    """Largest multiple-of-128 tile of the feature axis that divides Dl and
    fits the VMEM budget; prefers an even tile count so the reduction can be
    split across two TensorCores (v7x)."""
    max_tile = max(128, (_LAYER_TILE_BYTES // (n * itemsize)) // 128 * 128)
    if metric == 'l1':
        # Also bound the per-tile (N, N, tile) f32 broadcasted-|diff| temp.
        max_tile = min(
            max_tile,
            max(128, (_L1_INTERMEDIATE_BYTES // (n * n * 4)) // 128 * 128))
    if dl <= max_tile:
        return dl                     # whole feature axis in a single block
    best = best_even = None
    t = 128
    while t <= max_tile:
        if dl % t == 0:
            best = t
            if (dl // t) % 2 == 0:
                best_even = t
        t += 128
    if best is None:
        # TODO(synk): pad Dl up to a multiple of 128 instead of falling back to
        # one (possibly VMEM-heavy) full block.
        return dl
    return best_even if best_even is not None else best


def _pairwise_stats_kernel(layer_ref, acc_ref, sq_ref, *, metric):
    """Accumulate pairwise statistics of one (N, tile_dl) slab of `layer`.

      l2 / cosine : acc += x @ x.T  (MXU, f32 accumulation)
                    sq  += row-wise sum of x^2          (f32 VPU)
      l1          : acc += sum_d |x[j, d] - x[i, d]|

    acc / sq are per-split partial accumulators: output blocks stay resident
    in VMEM across the "arbitrary" tile axis and are combined in the wrapper.
    """
    @pl.when(pl.program_id(1) == 0)
    def _init():
        acc_ref[...] = jnp.zeros_like(acc_ref)
        sq_ref[...] = jnp.zeros_like(sq_ref)

    x = layer_ref[...]                       # (N, tile_dl), native dtype (bf16 ok)
    xf = x.astype(jnp.float32)               # elementwise VPU work in f32
                                             # (v5e has no bf16 VPU support)

    if metric in ('l2', 'cosine'):
        # Transposed-RHS gram form: both operands contract the feature axis so
        # the MXU consumes the (N, tile) slab directly (no per-step XLU
        # transpose of the large tile).  At N=8 the MXU output tile is tiny;
        # if N ever grows toward MXU-native sizes, block the (i, j) output
        # space in 128/256-aligned tiles instead.
        acc_ref[...] += jax.lax.dot_general(
            x, x, (((1,), (1,)), ((), ())),
            preferred_element_type=jnp.float32)
        # Squared row norms accumulated directly (no eye-mask diag extraction).
        sq_ref[...] += jnp.sum(xf * xf, axis=1, keepdims=True)
    elif metric == 'l1':
        # Tile-local broadcasted |diff|: the tile is capped so this (N, N, tile)
        # f32 temp stays ~1 MiB (never the full (N, N, Dl) intermediate).
        # For much larger N, switch to an unrolled fori_loop over rows.
        diff = xf[None, :, :] - xf[:, None, :]
        acc_ref[...] += jnp.sum(jnp.abs(diff), axis=-1)
    else:
        raise ValueError(metric)


def diversity_loss(noises, layer, metric='l2'):
    """noises: (N, Dn); layer: (N, C, H, W) or (N, Dl). Returns a scalar loss."""
    if metric not in ('l1', 'l2', 'cosine'):
        raise ValueError(metric)

    n = layer.shape[0]
    layer2d = layer.reshape(n, -1) if layer.ndim > 2 else layer   # .view(N, -1)
    dl = layer2d.shape[1]
    itemsize = layer2d.dtype.itemsize

    tile_dl = _choose_tile_dl(dl, n, itemsize, metric)
    num_tiles = dl // tile_dl                 # exact division by construction
    # Split the Dl reduction across 2 cores when there is enough work
    # (v7x megacore; sequential and harmless on single-TC v5e/v6e).
    num_splits = 2 if (num_tiles >= 2 and num_tiles % 2 == 0) else 1
    tiles_per_split = num_tiles // num_splits

    if metric == 'l1':
        flops = 3 * n * n * dl
    else:
        flops = 2 * n * n * dl + 3 * n * dl
    bytes_accessed = n * dl * itemsize + num_splits * (n * n + n) * 4

    kernel = functools.partial(_pairwise_stats_kernel, metric=metric)
    acc_parts, sq_parts = pl.pallas_call(
        kernel,
        out_shape=(jax.ShapeDtypeStruct((num_splits, n, n), jnp.float32),
                   jax.ShapeDtypeStruct((num_splits, n, 1), jnp.float32)),
        grid=(num_splits, tiles_per_split),
        in_specs=[pl.BlockSpec((n, tile_dl),
                               lambda s, k: (0, s * tiles_per_split + k))],
        out_specs=(pl.BlockSpec((None, n, n), lambda s, k: (s, 0, 0)),
                   pl.BlockSpec((None, n, 1), lambda s, k: (s, 0, 0))),
        compiler_params=pltpu.CompilerParams(
            dimension_semantics=("parallel", "arbitrary")),
        cost_estimate=pl.CostEstimate(flops=flops, transcendentals=0,
                                      bytes_accessed=bytes_accessed),
    )(layer2d)                                # native dtype: no wrapper f32 cast

    # ---- tiny O(N^2) epilogue in plain JAX: combine per-core partials, build
    #      the distances, noise pairwise distance, and the final exp-mean. ----
    acc = jnp.sum(acc_parts, axis=0)          # (N, N) gram / |diff| sums, f32
    if metric == 'l2':
        sq = jnp.sum(sq_parts, axis=0)        # (N, 1)
        # Gram-trick distance; clamp at 0 (diagonal comes out +/- epsilon).
        layer_dist = jnp.maximum(sq + sq.T - 2.0 * acc, 0.0) / float(dl)
    elif metric == 'cosine':
        sq = jnp.maximum(jnp.sum(sq_parts, axis=0), 0.0)    # clamp before sqrt
        norm = jnp.sqrt(sq)                   # (N, 1)
        layer_dist = 1.0 - acc / jnp.maximum(norm * norm.T, 1e-8)  # torch eps
    else:                                     # 'l1'
        layer_dist = acc / float(dl)

    z = noises.astype(jnp.float32)            # (N, Dn) — tiny
    zdiff = z[None, :, :] - z[:, None, :]
    noise_dist = jnp.mean(zdiff * zdiff, axis=-1)            # (N, N)

    return jnp.exp(jnp.mean(-noise_dist * layer_dist))


if __name__ == "__main__":
    key = jax.random.PRNGKey(0)
    k_noise, k_layer, k_big = jax.random.split(key, 3)

    # Small shapes consistent with the forward pass:
    #   noises: (batch, noise_dim) = (8, 32)
    #   layer : conv feature map NCHW = (8, 4, 16, 16) -> flattened to (8, 1024)
    noises = jax.random.normal(k_noise, (8, 32), dtype=jnp.float32)
    layer = jax.random.normal(k_layer, (8, 4, 16, 16), dtype=jnp.float32)

    losses = []
    for metric in ('l2', 'l1', 'cosine'):
        losses.append(diversity_loss(noises, layer, metric=metric))

    # Larger feature map: exercises the tiled (pipelined) Dl reduction and the
    # 2-way core split (grid = (2, tiles_per_split)).
    layer_big = jax.random.normal(k_big, (8, 32, 64, 64), dtype=jnp.float32)
    losses.append(diversity_loss(noises, layer_big, metric='l2'))

    jax.block_until_ready(losses)
    print("KERNEL_OK")
</pallas_src>

<mosaic_0001>
module attributes {stable_mosaic.version = 11 : i64} {
  func.func @_pairwise_stats_kernel(%arg0: i32, %arg1: i32, %arg2: memref<8x1024xf32, #tpu.memory_space<vmem>>, %arg3: memref<1x8x8xf32, #tpu.memory_space<vmem>>, %arg4: memref<1x8x1xf32, #tpu.memory_space<vmem>>) attributes {dimension_semantics = [#tpu.dimension_semantics<parallel>, #tpu.dimension_semantics<arbitrary>], iteration_bounds = array<i64: 1, 1>, scalar_prefetch = 0 : i64, scratch_operands = 0 : i64, tpu.core_type = #tpu.core_type<tc>, window_params = [{transform_indices = @transform_0, window_bounds = array<i64: 8, 1024>}, {transform_indices = @transform_1, window_bounds = array<i64: 1, 8, 8>}, {transform_indices = @transform_2, window_bounds = array<i64: 1, 8, 1>}]} {
    %c0_i32 = arith.constant 0 : i32
    %0 = arith.cmpi eq, %arg1, %c0_i32 : i32
    %1 = arith.extui %0 : i1 to i32
    %c0_i32_0 = arith.constant 0 : i32
    %2 = arith.cmpi ne, %1, %c0_i32_0 : i32
    scf.if %2 {
      %cst_15 = arith.constant 0.000000e+00 : f32
      %20 = vector.broadcast %cst_15 : f32 to vector<8x8xf32>
      %c0_16 = arith.constant 0 : index
      %c0_17 = arith.constant 0 : index
      %c0_18 = arith.constant 0 : index
      %21 = vector.load %arg3[%c0_16, %c0_17, %c0_18] : memref<1x8x8xf32, #tpu.memory_space<vmem>>, vector<1x8x8xf32>
      %22 = vector.shape_cast %21 : vector<1x8x8xf32> to vector<8x8xf32>
      %23 = vector.shape_cast %20 : vector<8x8xf32> to vector<1x8x8xf32>
      tpu.vector_store %arg3[%c0_16, %c0_17, %c0_18], %23 {strides = array<i32>} : memref<1x8x8xf32, #tpu.memory_space<vmem>>, vector<1x8x8xf32>,
      %cst_19 = arith.constant 0.000000e+00 : f32
      %24 = vector.broadcast %cst_19 : f32 to vector<8x1xf32>
      %c0_20 = arith.constant 0 : index
      %c0_21 = arith.constant 0 : index
      %c0_22 = arith.constant 0 : index
      %25 = vector.load %arg4[%c0_20, %c0_21, %c0_22] : memref<1x8x1xf32, #tpu.memory_space<vmem>>, vector<1x8x1xf32>
      %26 = vector.shape_cast %25 : vector<1x8x1xf32> to vector<8x1xf32>
      %27 = vector.shape_cast %24 : vector<8x1xf32> to vector<1x8x1xf32>
      tpu.vector_store %arg4[%c0_20, %c0_21, %c0_22], %27 {strides = array<i32>} : memref<1x8x1xf32, #tpu.memory_space<vmem>>, vector<1x8x1xf32>,
    } else {
    }
    %c0 = arith.constant 0 : index
    %c0_1 = arith.constant 0 : index
    %3 = vector.load %arg2[%c0, %c0_1] : memref<8x1024xf32, #tpu.memory_space<vmem>>, vector<8x1024xf32>
    %c0_2 = arith.constant 0 : index
    %c0_3 = arith.constant 0 : index
    %c0_4 = arith.constant 0 : index
    %4 = vector.load %arg3[%c0_2, %c0_3, %c0_4] : memref<1x8x8xf32, #tpu.memory_space<vmem>>, vector<1x8x8xf32>
    %5 = vector.shape_cast %4 : vector<1x8x8xf32> to vector<8x8xf32>
    %cst = arith.constant dense<0.000000e+00> : vector<8x8xf32>
    %6 = tpu.matmul %3, %3, %cst {dimension_numbers = #tpu.dot_dimension_numbers<[1], [1], [0], [0], [0, 0, 1, 0], [], []>} : vector<8x1024xf32>, vector<8x1024xf32>, vector<8x8xf32> -> vector<8x8xf32>
    %7 = arith.addf %5, %6 : vector<8x8xf32>
    %c0_5 = arith.constant 0 : index
    %c0_6 = arith.constant 0 : index
    %c0_7 = arith.constant 0 : index
    %8 = vector.load %arg3[%c0_5, %c0_6, %c0_7] : memref<1x8x8xf32, #tpu.memory_space<vmem>>, vector<1x8x8xf32>
    %9 = vector.shape_cast %8 : vector<1x8x8xf32> to vector<8x8xf32>
    %10 = vector.shape_cast %7 : vector<8x8xf32> to vector<1x8x8xf32>
    tpu.vector_store %arg3[%c0_5, %c0_6, %c0_7], %10 {strides = array<i32>} : memref<1x8x8xf32, #tpu.memory_space<vmem>>, vector<1x8x8xf32>,
    %c0_8 = arith.constant 0 : index
    %c0_9 = arith.constant 0 : index
    %c0_10 = arith.constant 0 : index
    %11 = vector.load %arg4[%c0_8, %c0_9, %c0_10] : memref<1x8x1xf32, #tpu.memory_space<vmem>>, vector<1x8x1xf32>
    %12 = vector.shape_cast %11 : vector<1x8x1xf32> to vector<8x1xf32>
    %13 = arith.mulf %3, %3 : vector<8x1024xf32>
    %cst_11 = arith.constant dense<0.000000e+00> : vector<8xf32>
    %14 = vector.multi_reduction <add>, %13, %cst_11 [1] : vector<8x1024xf32> to vector<8xf32>
    %15 = vector.shape_cast %14 : vector<8xf32> to vector<8x1xf32>
    %16 = arith.addf %12, %15 : vector<8x1xf32>
    %c0_12 = arith.constant 0 : index
    %c0_13 = arith.constant 0 : index
    %c0_14 = arith.constant 0 : index
    %17 = vector.load %arg4[%c0_12, %c0_13, %c0_14] : memref<1x8x1xf32, #tpu.memory_space<vmem>>, vector<1x8x1xf32>
    %18 = vector.shape_cast %17 : vector<1x8x1xf32> to vector<8x1xf32>
    %19 = vector.shape_cast %16 : vector<8x1xf32> to vector<1x8x1xf32>
    tpu.vector_store %arg4[%c0_12, %c0_13, %c0_14], %19 {strides = array<i32>} : memref<1x8x1xf32, #tpu.memory_space<vmem>>, vector<1x8x1xf32>,
    return
  }
  func.func @transform_0(%arg0: i32, %arg1: i32) -> (i32, i32) {
    %c1_i32 = arith.constant 1 : i32
    %0 = arith.muli %arg0, %c1_i32 : i32
    %1 = arith.addi %0, %arg1 : i32
    %c0_i32 = arith.constant 0 : i32
    %c0_i32_0 = arith.constant 0 : i32
    return %c0_i32, %1 : i32, i32
  }
  func.func @transform_1(%arg0: i32, %arg1: i32) -> (i32, i32, i32) {
    %c0_i32 = arith.constant 0 : i32
    %c0_i32_0 = arith.constant 0 : i32
    %c0_i32_1 = arith.constant 0 : i32
    return %arg0, %c0_i32, %c0_i32_0 : i32, i32, i32
  }
  func.func @transform_2(%arg0: i32, %arg1: i32) -> (i32, i32, i32) {
    %c0_i32 = arith.constant 0 : i32
    %c0_i32_0 = arith.constant 0 : i32
    %c0_i32_1 = arith.constant 0 : i32
    return %arg0, %c0_i32, %c0_i32_0 : i32, i32, i32
  }
}

</mosaic_0001>

<llo_original>
// kernel: tpu_custom_call.1
$region0: #{tpu_custom_call.1}
  #allocation0 [shape = 'u32[]', space=smem, size = 0x4, offset = 0x4, fixed_abs, tag = 'smem constant byte address 0x4 - core index']
  #allocation1 [shape = 'u32[144,128]{1,0:T(1,128)}', space=vmem, size = 0x12000, scoped, tag = 'internal scratch']
  %s0 = inlined_call_operand.hbm [shape: f32[8,1024], index: 0, kind: input, shape index: {}]
  %s1 = inlined_call_operand.hbm [shape: f32[1,8,8], index: 1, kind: output, shape index: {0}]
  %s2 = inlined_call_operand.vmem [shape: f32[1,8,1], index: 2, kind: output, shape index: {1}]
  %3 = xla_tuple %s1, %s2
  %s4 = sld [smem:[#allocation0]]
  $region30: #{tpu_custom_call.1} parent=0
    _
  %s6 = ssub.s32 1, %s4
  %s7 = scalar_select 0, %s6, %s4
  $region1: #{tpu_custom_call.1} parent=0
    #allocation2 [shape = 'u8[32768]{0}', space=vmem, size = 0x8000, scoped, tag = 'input window, operand 0, single buffered']
    #allocation3 [shape = 's32[1]{0}', space=sflag, size = 0x4, scoped, tag = 'scoped memory for tpu_custom_call.1']
    #allocation4 [shape = 's32[1]{0}', space=sflag, size = 0x4, scoped, tag = 'scoped memory for tpu_custom_call.1']
    #allocation5 [shape = 'u8[4096]{0}', space=vmem, size = 0x1000, scoped, tag = 'output window, operand 0, single buffered']
    %8 = vsyncpa [#allocation3], 0
    %9 = vsyncpa [#allocation4], 0
    // Predicated region
    $region2: #{tpu_custom_call.1} parent=1 // pred_check
      _
    $region3: #{tpu_custom_call.1} parent=1 // pred_check_branch
      %11 = sbr.rel (0) target = $region5
    $region4: #{tpu_custom_call.1} parent=1 // pred_region
      %s12 = sadd.s32 0, 0
      %s13 = smul.u32 8, %s12
      %s15 = ssub.s32 1024, 1024
      %16 = vsyncadd [#allocation3], %s15
      %s17 = smul.addr %s13, 128
      %s18 = scalar_lea.hbm %s0, %s17
      %s20 = sshll.u32 [#allocation2], 4
      %s21 = int_to_ptr.vmem [resolvable:$true] %s20
      %23 = dma.hbm_to_vmem [thread:$0]  %s18, 1024, %s21, [#allocation3]
    $region5: #{tpu_custom_call.1} parent=1 // pred_fallthru
      _
    // Predicated region
    $region6: #{tpu_custom_call.1} parent=1 // pred_check
      _
    $region7: #{tpu_custom_call.1} parent=1 // pred_check_branch
      %25 = sbr.rel (0) target = $region9
    $region8: #{tpu_custom_call.1} parent=1 // pred_region
      %26 = dma.done [#allocation3], 1024
    $region9: #{tpu_custom_call.1} parent=1 // pred_fallthru
      _
    %s27 = sadd.s32 0, 0
    %s28 = smul.u32 8, %s27
    %p29 = scmp.eq.s32.totalorder 0, 0
    // Predicated region
    $region10: #{tpu_custom_call.1} parent=1 // pred_check
      %p30 = pneg %p29
    $region11: #{tpu_custom_call.1} parent=1 // pred_check_branch
      %32 = sbr.rel (%p30) target = $region13
    $region12: #{tpu_custom_call.1} parent=1 // pred_region
      %vm33 = vcmask 64512
      %34 = vst.msk [vmem:[#allocation5] sm:$0xff] %vm33, 0.0
      %vm35 = vcmask 7168
      %36 = vst.msk [vmem:[%s2] sm:$0xff] %vm35, 0.0
    $region13: #{tpu_custom_call.1} parent=1 // pred_fallthru
      _
    %v37 = vld [vmem:[#allocation2] sm:$0xff]
    %v38 = vld [vmem:[#allocation2 + $0x8] sm:$0xff]
    %v39 = vld [vmem:[#allocation2 + $0x10] sm:$0xff]
    %v40 = vld [vmem:[#allocation2 + $0x18] sm:$0xff]
    %v41 = vld [vmem:[#allocation2 + $0x20] sm:$0xff]
    %v42 = vld [vmem:[#allocation2 + $0x28] sm:$0xff]
    %v43 = vld [vmem:[#allocation2 + $0x30] sm:$0xff]
    %v44 = vld [vmem:[#allocation2 + $0x38] sm:$0xff]
    %v45 = vld [vmem:[#allocation5] sm:$0xff]
    %46 = vmatprep.subr.mxu0 0.0
    %47 = vmatpush1.xpose.msra.mxu0 0.0
    %48 = vmatprep.subr.mxu0 0.0
    %49 = vmatpush1.xpose.msra.mxu0 0.0
    %50 = vmatprep.subr.mxu0 0.0
    %51 = vmatpush1.xpose.msra.mxu0 0.0
    %52 = vmatprep.subr.mxu0 0.0
    %53 = vmatpush1.xpose.msra.mxu0 0.0
    %54 = vmatprep.subr.mxu0 0.0
    %55 = vmatpush1.xpose.msra.mxu0 0.0
    %56 = vmatprep.subr.mxu0 0.0
    %57 = vmatpush1.xpose.msra.mxu0 0.0
    %58 = vmatprep.subr.mxu0 0.0
    %59 = vmatpush1.xpose.msra.mxu0 0.0
    %60 = vmatprep.subr.mxu0 0.0
    %61 = vmatpush1.xpose.msra.mxu0 0.0
    %62 = vmatprep.subr.mxu0 0.0
    %63 = vmatpush1.xpose.msra.mxu0 0.0
    %64 = vmatprep.subr.mxu0 0.0
    %65 = vmatpush1.xpose.msra.mxu0 0.0
    %66 = vmatprep.subr.mxu0 0.0
    %67 = vmatpush1.xpose.msra.mxu0 0.0
    %68 = vmatprep.subr.mxu0 0.0
    %69 = vmatpush1.xpose.msra.mxu0 0.0
    %70 = vmatprep.subr.mxu0 0.0
    %71 = vmatpush1.xpose.msra.mxu0 0.0
    %72 = vmatprep.subr.mxu0 0.0
    %73 = vmatpush1.xpose.msra.mxu0 0.0
    %74 = vmatprep.subr.mxu0 0.0
    %75 = vmatpush1.xpose.msra.mxu0 0.0
    %76 = vmatprep.subr.mxu0 %v38
    %77 = vmatpush1.xpose.msra.mxu0 %v37
    %78 = vmatprep.subr.mxu0 0.0
    %79 = vmatpush2.xpose.msra.mxu0 0.0
    %80 = vmatprep.subr.mxu0 0.0
    %81 = vmatpush2.xpose.msra.mxu0 0.0
    %82 = vmatprep.subr.mxu0 0.0
    %83 = vmatpush2.xpose.msra.mxu0 0.0
    %84 = vmatprep.subr.mxu0 0.0
    %85 = vmatpush2.xpose.msra.mxu0 0.0
    %86 = vmatprep.subr.mxu0 0.0
    %87 = vmatpush2.xpose.msra.mxu0 0.0
    %88 = vmatprep.subr.mxu0 0.0
    %89 = vmatpush2.xpose.msra.mxu0 0.0
    %90 = vmatprep.subr.mxu0 0.0
    %91 = vmatpush2.xpose.msra.mxu0 0.0
    %92 = vmatprep.subr.mxu0 0.0
    %93 = vmatpush2.xpose.msra.mxu0 0.0
    %94 = vmatprep.subr.mxu0 0.0
    %95 = vmatpush2.xpose.msra.mxu0 0.0
    %96 = vmatprep.subr.mxu0 0.0
    %97 = vmatpush2.xpose.msra.mxu0 0.0
    %98 = vmatprep.subr.mxu0 0.0
    %99 = vmatpush2.xpose.msra.mxu0 0.0
    %100 = vmatprep.subr.mxu0 0.0
    %101 = vmatpush2.xpose.msra.mxu0 0.0
    %102 = vmatprep.subr.mxu0 0.0
    %103 = vmatpush2.xpose.msra.mxu0 0.0
    %104 = vmatprep.subr.mxu0 0.0
    %105 = vmatpush2.xpose.msra.mxu0 0.0
    %106 = vmatprep.subr.mxu0 0.0
    %107 = vmatpush2.xpose.msra.mxu0 0.0
    %108 = vmatprep.subr.mxu0 0.0
    %109 = vmatpush2.xpose.msra.mxu0 0.0
    %110 = vmatprep.mubr.f32.mxu0 %v38
    %111 = vmatmul.mubr.f32.gmra.mxu0 %v37
    %v112 = vpop.f32.mrf.mxu0
    %v113 = vadd.f32 0.0, %v112
    %v114 = vpop.f32.mrf.mxu0
    %115 = vdwg.mxu0
    %116 = vmatprep.subr.mxu0 0.0
    %117 = vmatpush1.xpose.msra.mxu0 0.0
    %118 = vmatprep.subr.mxu0 0.0
    %119 = vmatpush1.xpose.msra.mxu0 0.0
    %120 = vmatprep.subr.mxu0 0.0
    %121 = vmatpush1.xpose.msra.mxu0 0.0
    %122 = vmatprep.subr.mxu0 0.0
    %123 = vmatpush1.xpose.msra.mxu0 0.0
    %124 = vmatprep.subr.mxu0 0.0
    %125 = vmatpush1.xpose.msra.mxu0 0.0
    %126 = vmatprep.subr.mxu0 0.0
    %127 = vmatpush1.xpose.msra.mxu0 0.0
    %128 = vmatprep.subr.mxu0 0.0
    %129 = vmatpush1.xpose.msra.mxu0 0.0
    %130 = vmatprep.subr.mxu0 0.0
    %131 = vmatpush1.xpose.msra.mxu0 0.0
    %132 = vmatprep.subr.mxu0 0.0
    %133 = vmatpush1.xpose.msra.mxu0 0.0
    %134 = vmatprep.subr.mxu0 0.0
    %135 = vmatpush1.xpose.msra.mxu0 0.0
    %136 = vmatprep.subr.mxu0 0.0
    %137 = vmatpush1.xpose.msra.mxu0 0.0
    %138 = vmatprep.subr.mxu0 0.0
    %139 = vmatpush1.xpose.msra.mxu0 0.0
    %140 = vmatprep.subr.mxu0 0.0
    %141 = vmatpush1.xpose.msra.mxu0 0.0
    %142 = vmatprep.subr.mxu0 0.0
    %143 = vmatpush1.xpose.msra.mxu0 0.0
    %144 = vmatprep.subr.mxu0 0.0
    %145 = vmatpush1.xpose.msra.mxu0 0.0
    %146 = vmatprep.subr.mxu0 %v40
    %147 = vmatpush1.xpose.msra.mxu0 %v39
    %148 = vmatprep.subr.mxu0 0.0
    %149 = vmatpush2.xpose.msra.mxu0 0.0
    %150 = vmatprep.subr.mxu0 0.0
    %151 = vmatpush2.xpose.msra.mxu0 0.0
    %152 = vmatprep.subr.mxu0 0.0
    %153 = vmatpush2.xpose.msra.mxu0 0.0
    %154 = vmatprep.subr.mxu0 0.0
    %155 = vmatpush2.xpose.msra.mxu0 0.0
    %156 = vmatprep.subr.mxu0 0.0
    %157 = vmatpush2.xpose.msra.mxu0 0.0
    %158 = vmatprep.subr.mxu0 0.0
    %159 = vmatpush2.xpose.msra.mxu0 0.0
    %160 = vmatprep.subr.mxu0 0.0
    %161 = vmatpush2.xpose.msra.mxu0 0.0
    %162 = vmatprep.subr.mxu0 0.0
    %163 = vmatpush2.xpose.msra.mxu0 0.0
    %164 = vmatprep.subr.mxu0 0.0
    %165 = vmatpush2.xpose.msra.mxu0 0.0
    %166 = vmatprep.subr.mxu0 0.0
    %167 = vmatpush2.xpose.msra.mxu0 0.0
    %168 = vmatprep.subr.mxu0 0.0
    %169 = vmatpush2.xpose.msra.mxu0 0.0
    %170 = vmatprep.subr.mxu0 0.0
    %171 = vmatpush2.xpose.msra.mxu0 0.0
    %172 = vmatprep.subr.mxu0 0.0
    %173 = vmatpush2.xpose.msra.mxu0 0.0
    %174 = vmatprep.subr.mxu0 0.0
    %175 = vmatpush2.xpose.msra.mxu0 0.0
    %176 = vmatprep.subr.mxu0 0.0
    %177 = vmatpush2.xpose.msra.mxu0 0.0
    %178 = vmatprep.subr.mxu0 0.0
    %179 = vmatpush2.xpose.msra.mxu0 0.0
    %180 = vmatprep.mubr.f32.mxu0 %v40
    %181 = vmatmul.mubr.f32.gmra.mxu0 %v39
    %v182 = vpop.f32.mrf.mxu0
    %v183 = vadd.f32 %v113, %v182
    %v184 = vpop.f32.mrf.mxu0
    %185 = vdwg.mxu0
    %186 = vmatprep.subr.mxu0 0.0
    %187 = vmatpush1.xpose.msra.mxu0 0.0
    %188 = vmatprep.subr.mxu0 0.0
    %189 = vmatpush1.xpose.msra.mxu0 0.0
    %190 = vmatprep.subr.mxu0 0.0
    %191 = vmatpush1.xpose.msra.mxu0 0.0
    %192 = vmatprep.subr.mxu0 0.0
    %193 = vmatpush1.xpose.msra.mxu0 0.0
    %194 = vmatprep.subr.mxu0 0.0
    %195 = vmatpush1.xpose.msra.mxu0 0.0
    %196 = vmatprep.subr.mxu0 0.0
    %197 = vmatpush1.xpose.msra.mxu0 0.0
    %198 = vmatprep.subr.mxu0 0.0
    %199 = vmatpush1.xpose.msra.mxu0 0.0
    %200 = vmatprep.subr.mxu0 0.0
    %201 = vmatpush1.xpose.msra.mxu0 0.0
    %202 = vmatprep.subr.mxu0 0.0
    %203 = vmatpush1.xpose.msra.mxu0 0.0
    %204 = vmatprep.subr.mxu0 0.0
    %205 = vmatpush1.xpose.msra.mxu0 0.0
    %206 = vmatprep.subr.mxu0 0.0
    %207 = vmatpush1.xpose.msra.mxu0 0.0
    %208 = vmatprep.subr.mxu0 0.0
    %209 = vmatpush1.xpose.msra.mxu0 0.0
    %210 = vmatprep.subr.mxu0 0.0
    %211 = vmatpush1.xpose.msra.mxu0 0.0
    %212 = vmatprep.subr.mxu0 0.0
    %213 = vmatpush1.xpose.msra.mxu0 0.0
    %214 = vmatprep.subr.mxu0 0.0
    %215 = vmatpush1.xpose.msra.mxu0 0.0
    %216 = vmatprep.subr.mxu0 %v42
    %217 = vmatpush1.xpose.msra.mxu0 %v41
    %218 = vmatprep.subr.mxu0 0.0
    %219 = vmatpush2.xpose.msra.mxu0 0.0
    %220 = vmatprep.subr.mxu0 0.0
    %221 = vmatpush2.xpose.msra.mxu0 0.0
    %222 = vmatprep.subr.mxu0 0.0
    %223 = vmatpush2.xpose.msra.mxu0 0.0
    %224 = vmatprep.subr.mxu0 0.0
    %225 = vmatpush2.xpose.msra.mxu0 0.0
    %226 = vmatprep.subr.mxu0 0.0
    %227 = vmatpush2.xpose.msra.mxu0 0.0
    %228 = vmatprep.subr.mxu0 0.0
    %229 = vmatpush2.xpose.msra.mxu0 0.0
    %230 = vmatprep.subr.mxu0 0.0
    %231 = vmatpush2.xpose.msra.mxu0 0.0
    %232 = vmatprep.subr.mxu0 0.0
    %233 = vmatpush2.xpose.msra.mxu0 0.0
    %234 = vmatprep.subr.mxu0 0.0
    %235 = vmatpush2.xpose.msra.mxu0 0.0
    %236 = vmatprep.subr.mxu0 0.0
    %237 = vmatpush2.xpose.msra.mxu0 0.0
    %238 = vmatprep.subr.mxu0 0.0
    %239 = vmatpush2.xpose.msra.mxu0 0.0
    %240 = vmatprep.subr.mxu0 0.0
    %241 = vmatpush2.xpose.msra.mxu0 0.0
    %242 = vmatprep.subr.mxu0 0.0
    %243 = vmatpush2.xpose.msra.mxu0 0.0
    %244 = vmatprep.subr.mxu0 0.0
    %245 = vmatpush2.xpose.msra.mxu0 0.0
    %246 = vmatprep.subr.mxu0 0.0
    %247 = vmatpush2.xpose.msra.mxu0 0.0
    %248 = vmatprep.subr.mxu0 0.0
    %249 = vmatpush2.xpose.msra.mxu0 0.0
    %250 = vmatprep.mubr.f32.mxu0 %v42
    %251 = vmatmul.mubr.f32.gmra.mxu0 %v41
    %v252 = vpop.f32.mrf.mxu0
    %v253 = vadd.f32 %v183, %v252
    %v254 = vpop.f32.mrf.mxu0
    %255 = vdwg.mxu0
    %256 = vmatprep.subr.mxu0 0.0
    %257 = vmatpush1.xpose.msra.mxu0 0.0
    %258 = vmatprep.subr.mxu0 0.0
    %259 = vmatpush1.xpose.msra.mxu0 0.0
    %260 = vmatprep.subr.mxu0 0.0
    %261 = vmatpush1.xpose.msra.mxu0 0.0
    %262 = vmatprep.subr.mxu0 0.0
    %263 = vmatpush1.xpose.msra.mxu0 0.0
    %264 = vmatprep.subr.mxu0 0.0
    %265 = vmatpush1.xpose.msra.mxu0 0.0
    %266 = vmatprep.subr.mxu0 0.0
    %267 = vmatpush1.xpose.msra.mxu0 0.0
    %268 = vmatprep.subr.mxu0 0.0
    %269 = vmatpush1.xpose.msra.mxu0 0.0
    %270 = vmatprep.subr.mxu0 0.0
    %271 = vmatpush1.xpose.msra.mxu0 0.0
    %272 = vmatprep.subr.mxu0 0.0
    %273 = vmatpush1.xpose.msra.mxu0 0.0
    %274 = vmatprep.subr.mxu0 0.0
    %275 = vmatpush1.xpose.msra.mxu0 0.0
    %276 = vmatprep.subr.mxu0 0.0
    %277 = vmatpush1.xpose.msra.mxu0 0.0
    %278 = vmatprep.subr.mxu0 0.0
    %279 = vmatpush1.xpose.msra.mxu0 0.0
    %280 = vmatprep.subr.mxu0 0.0
    %281 = vmatpush1.xpose.msra.mxu0 0.0
    %282 = vmatprep.subr.mxu0 0.0
    %283 = vmatpush1.xpose.msra.mxu0 0.0
    %284 = vmatprep.subr.mxu0 0.0
    %285 = vmatpush1.xpose.msra.mxu0 0.0
    %286 = vmatprep.subr.mxu0 %v44
    %287 = vmatpush1.xpose.msra.mxu0 %v43
    %288 = vmatprep.subr.mxu0 0.0
    %289 = vmatpush2.xpose.msra.mxu0 0.0
    %290 = vmatprep.subr.mxu0 0.0
    %291 = vmatpush2.xpose.msra.mxu0 0.0
    %292 = vmatprep.subr.mxu0 0.0
    %293 = vmatpush2.xpose.msra.mxu0 0.0
    %294 = vmatprep.subr.mxu0 0.0
    %295 = vmatpush2.xpose.msra.mxu0 0.0
    %296 = vmatprep.subr.mxu0 0.0
    %297 = vmatpush2.xpose.msra.mxu0 0.0
    %298 = vmatprep.subr.mxu0 0.0
    %299 = vmatpush2.xpose.msra.mxu0 0.0
    %300 = vmatprep.subr.mxu0 0.0
    %301 = vmatpush2.xpose.msra.mxu0 0.0
    %302 = vmatprep.subr.mxu0 0.0
    %303 = vmatpush2.xpose.msra.mxu0 0.0
    %304 = vmatprep.subr.mxu0 0.0
    %305 = vmatpush2.xpose.msra.mxu0 0.0
    %306 = vmatprep.subr.mxu0 0.0
    %307 = vmatpush2.xpose.msra.mxu0 0.0
    %308 = vmatprep.subr.mxu0 0.0
    %309 = vmatpush2.xpose.msra.mxu0 0.0
    %310 = vmatprep.subr.mxu0 0.0
    %311 = vmatpush2.xpose.msra.mxu0 0.0
    %312 = vmatprep.subr.mxu0 0.0
    %313 = vmatpush2.xpose.msra.mxu0 0.0
    %314 = vmatprep.subr.mxu0 0.0
    %315 = vmatpush2.xpose.msra.mxu0 0.0
    %316 = vmatprep.subr.mxu0 0.0
    %317 = vmatpush2.xpose.msra.mxu0 0.0
    %318 = vmatprep.subr.mxu0 0.0
    %319 = vmatpush2.xpose.msra.mxu0 0.0
    %320 = vmatprep.mubr.f32.mxu0 %v44
    %321 = vmatmul.mubr.f32.gmra.mxu0 %v43
    %v322 = vpop.f32.mrf.mxu0
    %v323 = vadd.f32 %v253, %v322
    %v324 = vpop.f32.mrf.mxu0
    %325 = vdwg.mxu0
    %v326 = vadd.f32 %v45, %v323
    %vm327 = vcmask 64512
    %328 = vst.msk [vmem:[#allocation5] sm:$0xff] %vm327, %v326
    %v329 = vld [vmem:[%s2] sm:$0xff]
    %v330 = vmul.f32 %v37, %v37
    %v331 = vmul.f32 %v38, %v38
    %v332 = vmul.f32 %v39, %v39
    %v333 = vmul.f32 %v40, %v40
    %v334 = vmul.f32 %v41, %v41
    %v335 = vmul.f32 %v42, %v42
    %v336 = vmul.f32 %v43, %v43
    %v337 = vmul.f32 %v44, %v44
    %v338 = vadd.f32 %v330, %v331
    %v339 = vadd.f32 %v338, %v332
    %v340 = vadd.f32 %v339, %v333
    %v341 = vadd.f32 %v340, %v334
    %v342 = vadd.f32 %v341, %v335
    %v343 = vadd.f32 %v342, %v336
    %v344 = vadd.f32 %v343, %v337
    %345 = vadd.xlane.f32.xlu0 %v344
    %v346 = vpop.xlane.xlu0 %345
    %v347 = vadd.f32 %v329, %v346
    %vm348 = vcmask 7168
    %349 = vst.msk [vmem:[%s2] sm:$0xff] %vm348, %v347
    // Predicated region
    $region14: #{tpu_custom_call.1} parent=1 // pred_check
      _
    $region15: #{tpu_custom_call.1} parent=1 // pred_check_branch
      %351 = sbr.rel (0) target = $region17
    $region16: #{tpu_custom_call.1} parent=1 // pred_region
      %s353 = ssub.s32 128, 128
      %354 = vsyncadd [#allocation4], %s353
      %s356 = sshll.u32 [#allocation5], 4
      %s357 = int_to_ptr.vmem [resolvable:$true] %s356
      %359 = dma.vmem_to_hbm [thread:$0]  %s357, 128, %s1, [#allocation4]
    $region17: #{tpu_custom_call.1} parent=1 // pred_fallthru
      _
    // Predicated region
    $region18: #{tpu_custom_call.1} parent=1 // pred_check
      _
    $region19: #{tpu_custom_call.1} parent=1 // pred_check_branch
      %361 = sbr.rel (0) target = $region21
    $region20: #{tpu_custom_call.1} parent=1 // pred_region
      _
    $region21: #{tpu_custom_call.1} parent=1 // pred_fallthru
      _
    // Predicated region
    $region22: #{tpu_custom_call.1} parent=1 // pred_check
      _
    $region23: #{tpu_custom_call.1} parent=1 // pred_check_branch
      %363 = sbr.rel (0) target = $region25
    $region24: #{tpu_custom_call.1} parent=1 // pred_region
      %364 = dma.done [#allocation4], 128
    $region25: #{tpu_custom_call.1} parent=1 // pred_fallthru
      _
    // Predicated region
    $region26: #{tpu_custom_call.1} parent=1 // pred_check
      _
    $region27: #{tpu_custom_call.1} parent=1 // pred_check_branch
      %366 = sbr.rel (0) target = $region29
    $region28: #{tpu_custom_call.1} parent=1 // pred_region
      _
    $region29: #{tpu_custom_call.1} parent=1 // pred_fallthru
      _
    %367 = vsyncpa [#allocation3], 1
    %368 = vsyncpa [#allocation4], 1

</llo_original>
